<compile_context>
chip_gen: v7x
topology: tpu7x:2x2x1
jax: 0.10.0
libtpu: 0.0.40
codegen_flags: <defaults>
</compile_context>

<pallas_src>
import jax
import jax.numpy as jnp
from jax import lax
from jax.experimental import pallas as pl
from jax.experimental.pallas import tpu as pltpu


# ----------------------------- helpers --------------------------------------

def _pool_out_dim(n, stride):
    # 3x3 window, padding 1, floor mode: floor((n + 2 - 3)/s) + 1
    return (n - 1) // stride + 1


def _ds(start, size, stride):
    # plain (contiguous) slice when stride == 1, strided slice otherwise
    return pl.ds(start, size) if stride == 1 else pl.ds(start, size, stride=stride)


def _recip_valid_count(H, W, stride):
    """1 / (#valid taps) per output position, for count_include_pad=False avg pool."""
    def valid(n):
        n_out = _pool_out_dim(n, stride)
        pos = stride * jnp.arange(n_out)[:, None] + jnp.arange(3)[None, :] - 1
        return jnp.sum((pos >= 0) & (pos < n), axis=1).astype(jnp.float32)
    vh = valid(H)                                     # (H_out,)
    vw = valid(W)                                     # (W_out,)
    return (1.0 / (vh[:, None] * vw[None, :]))[:, :, None]   # (H_out, W_out, 1)


# ----------------------------- Pallas kernel --------------------------------

def _make_pool_kernel(H, W, stride, mode, fuse_conv):
    """Fused (optional ReLU -> 1x1 conv -> BN) -> separable 3x3 pool kernel body."""
    H_out = _pool_out_dim(H, stride)
    W_out = _pool_out_dim(W, stride)
    pad_val = 0.0 if mode == "avg" else -jnp.inf
    comb = (lambda a, b: a + b) if mode == "avg" else jnp.maximum

    def kernel(*refs):
        refs = list(refs)
        x_ref = refs.pop(0)
        if fuse_conv:
            w_ref = refs.pop(0)
            scale_ref = refs.pop(0)
            bias_ref = refs.pop(0)
        rcount_ref = refs.pop(0) if mode == "avg" else None
        o_ref = refs.pop(0)
        pad_ref = refs.pop(0)
        row_ref = refs.pop(0) if stride > 1 else None

        if fuse_conv:
            # ReLU -> 1x1 conv (matmul over C_in) -> folded BN, entirely in VMEM.
            cin = x_ref.shape[-1]
            cb = w_ref.shape[-1]
            # feed MXU bf16 when activations are bf16 (f32 accumulation either way)
            dot_dt = jnp.bfloat16 if x_ref.dtype == jnp.bfloat16 else jnp.float32
            xm = jnp.maximum(x_ref[...], 0).astype(dot_dt).reshape(H * W, cin)
            y = jnp.dot(xm, w_ref[...].astype(dot_dt),
                        preferred_element_type=jnp.float32)
            y = y * scale_ref[...] + bias_ref[...]
            y = y.reshape(H, W, cb)
        else:
            y = x_ref[...].astype(jnp.float32)        # (H, W, Cb)

        # 1-pixel halo in a VMEM scratch (no extra HBM pad pass).
        pad_ref[...] = jnp.full(pad_ref.shape, pad_val, jnp.float32)
        pad_ref[1:H + 1, 1:W + 1, :] = y

        # Separable 3x3: W-direction taps (strided directly to output columns) ...
        r = comb(comb(pad_ref[:, _ds(0, W_out, stride), :],
                      pad_ref[:, _ds(1, W_out, stride), :]),
                 pad_ref[:, _ds(2, W_out, stride), :])          # (H+2, W_out, Cb)

        # ... then H-direction taps (strided to output rows).
        if stride == 1:
            out = comb(comb(r[0:H_out], r[1:H_out + 1]), r[2:H_out + 2])
        else:
            row_ref[...] = r
            out = comb(comb(row_ref[pl.ds(0, H_out, stride=stride), :, :],
                            row_ref[pl.ds(1, H_out, stride=stride), :, :]),
                       row_ref[pl.ds(2, H_out, stride=stride), :, :])

        if mode == "avg":
            out = out * rcount_ref[...]               # multiply by 1/valid-count
        o_ref[...] = out.astype(o_ref.dtype)

    return kernel, H_out, W_out


# ----------------------------- pallas_call wrapper ---------------------------

def _pool_pallas(x_nhwc, mode, stride, w=None, bn_scale=None, bn_bias=None):
    N, H, W, C_in = x_nhwc.shape
    fuse = w is not None
    C_out = int(w.shape[1]) if fuse else C_in
    kernel, H_out, W_out = _make_pool_kernel(H, W, stride, mode, fuse)

    # channel blocking on the lane dim (full C if small, 128-wide blocks otherwise)
    cb = C_out if (C_out <= 128 or C_out % 128 != 0) else 128
    grid = (N, C_out // cb)

    in_specs, inputs = [], []
    if fuse:
        in_specs += [pl.BlockSpec((None, H, W, C_in), lambda n, c: (n, 0, 0, 0)),
                     pl.BlockSpec((C_in, cb), lambda n, c: (0, c)),
                     pl.BlockSpec((1, cb), lambda n, c: (0, c)),
                     pl.BlockSpec((1, cb), lambda n, c: (0, c))]
        inputs += [x_nhwc, w,
                   bn_scale.reshape(1, C_out).astype(jnp.float32),
                   bn_bias.reshape(1, C_out).astype(jnp.float32)]
    else:
        in_specs += [pl.BlockSpec((None, H, W, cb), lambda n, c: (n, 0, 0, c))]
        inputs += [x_nhwc]
    if mode == "avg":
        in_specs += [pl.BlockSpec((H_out, W_out, 1), lambda n, c: (0, 0, 0))]
        inputs += [_recip_valid_count(H, W, stride)]

    out_specs = pl.BlockSpec((None, H_out, W_out, cb), lambda n, c: (n, 0, 0, c))

    scratch_shapes = [pltpu.VMEM((H + 2, W + 2, cb), jnp.float32)]
    if stride > 1:
        scratch_shapes += [pltpu.VMEM((H + 2, W_out, cb), jnp.float32)]

    # VMEM budget: double-buffered blocks + scratch + headroom, capped for v7x (64 MiB).
    isz = jnp.dtype(x_nhwc.dtype).itemsize
    in_blk = H * W * (C_in if fuse else cb) * isz
    out_blk = H_out * W_out * cb * isz
    side_blk = ((C_in * cb + 2 * cb) * 4 if fuse else 0)
    side_blk += (H_out * W_out * 4 if mode == "avg" else 0)
    scratch_b = ((H + 2) * (W + 2) * cb + (H + 2) * W_out * cb) * 4
    vmem_bytes = 2 * (in_blk + out_blk + side_blk) + scratch_b + (4 << 20)
    vmem_bytes = int(min(max(vmem_bytes, 16 << 20), 64 << 20))

    return pl.pallas_call(
        kernel,
        out_shape=jax.ShapeDtypeStruct((N, H_out, W_out, C_out), x_nhwc.dtype),
        grid_spec=pltpu.PrefetchScalarGridSpec(
            num_scalar_prefetch=0,
            grid=grid,
            in_specs=in_specs,
            out_specs=out_specs,
            scratch_shapes=scratch_shapes),
        compiler_params=pltpu.CompilerParams(
            dimension_semantics=("parallel", "parallel"),
            vmem_limit_bytes=vmem_bytes),
    )(*inputs)


# NHWC-native entry points (use these inside a full NAS cell to avoid transposes).
def pool3x3_nhwc(x_nhwc, mode, stride):
    return _pool_pallas(x_nhwc, mode, stride)


def relu_conv1x1_bn_pool3x3_nhwc(x_nhwc, w, bn_scale, bn_bias, mode, stride):
    return _pool_pallas(x_nhwc, mode, stride, w=w, bn_scale=bn_scale, bn_bias=bn_bias)


# ----------------------------- module wrapper --------------------------------

class PoolingPallas:
    """Pallas equivalent of the NAS POOLING module.  Input/output are NCHW."""

    def __init__(self, C_in, C_out, stride, mode, affine=True,
                 track_running_stats=True, num_prev_ops=1, num_prev_nodes=1,
                 is_node_zero=False, key=None):
        if mode not in ("avg", "max"):
            raise ValueError("Invalid mode={:} in POOLING".format(mode))
        self.stride = int(stride)
        self.mode = mode
        if C_in == C_out:
            self.w = None
        else:
            if key is None:
                key = jax.random.PRNGKey(0)
            # 1x1 conv weight stored as (C_in, C_out) for matmul
            self.w = jax.random.normal(key, (C_in, C_out), jnp.float32) * 0.1
            # TODO(synk): ConditionalBatchNorm2d source not provided; modeled as
            # inference-mode BatchNorm with fresh params (gamma=1, beta=0, mean=0,
            # var=1), identical for every prev_op/node, so prev_op_idx / first_layer
            # selection is a functional no-op here.
            eps = 1e-5
            gamma = jnp.ones((C_out,), jnp.float32)
            beta = jnp.zeros((C_out,), jnp.float32)
            r_mean = jnp.zeros((C_out,), jnp.float32)
            r_var = jnp.ones((C_out,), jnp.float32)
            self.bn_scale = gamma / jnp.sqrt(r_var + eps)
            self.bn_bias = beta - r_mean * self.bn_scale

    def __call__(self, x_nchw, prev_op_idx=(0,), first_layer=False):
        # NCHW <-> NHWC only at the PyTorch-facing boundary; a full cell should
        # stay NHWC and call the *_nhwc functions directly.
        x = jnp.transpose(x_nchw, (0, 2, 3, 1))
        if self.w is None:
            y = pool3x3_nhwc(x, self.mode, self.stride)
        else:
            y = relu_conv1x1_bn_pool3x3_nhwc(x, self.w, self.bn_scale, self.bn_bias,
                                             self.mode, self.stride)
        return jnp.transpose(y, (0, 3, 1, 2))


# ------------------------------ references ----------------------------------

def _ref_pool_nchw(x_nchw, mode, stride):
    xh = jnp.transpose(x_nchw, (0, 2, 3, 1))
    pad = [(0, 0), (1, 1), (1, 1), (0, 0)]
    win, strd = (1, 3, 3, 1), (1, stride, stride, 1)
    if mode == "max":
        out = lax.reduce_window(xh, -jnp.inf, lax.max, win, strd, pad)
    else:
        s = lax.reduce_window(xh, 0.0, lax.add, win, strd, pad)
        c = lax.reduce_window(jnp.ones_like(xh), 0.0, lax.add, win, strd, pad)
        out = s / c
    return jnp.transpose(out, (0, 3, 1, 2))


def _ref_preprocess_nchw(x_nchw, w, scale, bias):
    xh = jnp.maximum(jnp.transpose(x_nchw, (0, 2, 3, 1)), 0.0)
    yh = jnp.einsum("nhwc,cd->nhwd", xh, w) * scale + bias
    return jnp.transpose(yh, (0, 3, 1, 2))


# --------------------------------- main --------------------------------------

if __name__ == "__main__":
    key = jax.random.PRNGKey(0)
    k1, k2, k3 = jax.random.split(key, 3)

    # Case 1: C_in == C_out, avg pool, stride 2  (strided output in-kernel)
    x_same = jax.random.normal(k1, (2, 8, 16, 16), jnp.float32)   # NCHW
    op_avg = PoolingPallas(8, 8, stride=2, mode="avg")
    y_avg = op_avg(x_same)

    # Case 2: C_in == C_out, max pool, stride 1
    op_max = PoolingPallas(8, 8, stride=1, mode="max")
    y_max = op_max(x_same)

    # Case 3: C_in == C_out, max pool, stride 2
    op_max2 = PoolingPallas(8, 8, stride=2, mode="max")
    y_max2 = op_max2(x_same)

    # Case 4: C_in != C_out -> fused ReLU/1x1-conv/BN + avg pool, stride 1
    x_diff = jax.random.normal(k2, (2, 4, 16, 16), jnp.float32)   # NCHW
    op_pre = PoolingPallas(4, 8, stride=1, mode="avg", key=k3)
    y_pre = op_pre(x_diff)

    jax.block_until_ready((y_avg, y_max, y_max2, y_pre))

    # correctness checks against plain-JAX references
    ref_avg = _ref_pool_nchw(x_same, "avg", 2)
    ref_max = _ref_pool_nchw(x_same, "max", 1)
    ref_max2 = _ref_pool_nchw(x_same, "max", 2)
    ref_pre = _ref_pool_nchw(
        _ref_preprocess_nchw(x_diff, op_pre.w, op_pre.bn_scale, op_pre.bn_bias),
        "avg", 1)

    assert y_avg.shape == (2, 8, 8, 8) and y_max.shape == (2, 8, 16, 16)
    assert y_max2.shape == (2, 8, 8, 8) and y_pre.shape == (2, 8, 16, 16)
    assert jnp.max(jnp.abs(y_avg - ref_avg)) < 1e-5
    assert jnp.max(jnp.abs(y_max - ref_max)) < 1e-5
    assert jnp.max(jnp.abs(y_max2 - ref_max2)) < 1e-5
    assert jnp.max(jnp.abs(y_pre - ref_pre)) < 1e-4

    print("KERNEL_OK")
</pallas_src>

<mosaic_0001>
module attributes {stable_mosaic.version = 11 : i64} {
  func.func @kernel(%arg0: i32, %arg1: i32, %arg2: memref<1x16x16x8xf32, #tpu.memory_space<vmem>>, %arg3: memref<8x8x1xf32, #tpu.memory_space<vmem>>, %arg4: memref<1x8x8x8xf32, #tpu.memory_space<vmem>>, %arg5: memref<18x18x8xf32, #tpu.memory_space<vmem>>, %arg6: memref<18x8x8xf32, #tpu.memory_space<vmem>>) attributes {dimension_semantics = [#tpu.dimension_semantics<parallel>, #tpu.dimension_semantics<parallel>], iteration_bounds = array<i64: 2, 1>, scalar_prefetch = 0 : i64, scratch_operands = 2 : i64, tpu.core_type = #tpu.core_type<tc>, window_params = [{transform_indices = @transform_0, window_bounds = array<i64: 1, 16, 16, 8>}, {pipeline_mode = #tpu.pipeline_mode<synchronous>, transform_indices = @transform_1, window_bounds = array<i64: 8, 8, 1>}, {transform_indices = @transform_2, window_bounds = array<i64: 1, 8, 8, 8>}]} {
    %c0 = arith.constant 0 : index
    %c0_0 = arith.constant 0 : index
    %c0_1 = arith.constant 0 : index
    %c0_2 = arith.constant 0 : index
    %0 = vector.load %arg2[%c0, %c0_0, %c0_1, %c0_2] : memref<1x16x16x8xf32, #tpu.memory_space<vmem>>, vector<1x16x16x8xf32>
    %1 = vector.shape_cast %0 : vector<1x16x16x8xf32> to vector<16x16x8xf32>
    %cst = arith.constant 0.000000e+00 : f32
    %2 = vector.broadcast %cst : f32 to vector<18x18x8xf32>
    %c0_3 = arith.constant 0 : index
    %c0_4 = arith.constant 0 : index
    %c0_5 = arith.constant 0 : index
    %3 = vector.load %arg5[%c0_3, %c0_4, %c0_5] : memref<18x18x8xf32, #tpu.memory_space<vmem>>, vector<18x18x8xf32>
    tpu.vector_store %arg5[%c0_3, %c0_4, %c0_5], %2 {strides = array<i32>} : memref<18x18x8xf32, #tpu.memory_space<vmem>>, vector<18x18x8xf32>,
    %c1 = arith.constant 1 : index
    %c1_6 = arith.constant 1 : index
    %c0_7 = arith.constant 0 : index
    %4 = vector.load %arg5[%c1, %c1_6, %c0_7] : memref<18x18x8xf32, #tpu.memory_space<vmem>>, vector<16x16x8xf32>
    tpu.vector_store %arg5[%c1, %c1_6, %c0_7], %1 {strides = array<i32>} : memref<18x18x8xf32, #tpu.memory_space<vmem>>, vector<16x16x8xf32>,
    %c0_8 = arith.constant 0 : index
    %c0_9 = arith.constant 0 : index
    %c0_10 = arith.constant 0 : index
    %5 = tpu.strided_load %arg5[%c0_8, %c0_9, %c0_10] {strides = array<i32: 1, 2, 1>} : memref<18x18x8xf32, #tpu.memory_space<vmem>>, vector<18x8x8xf32>
    %c0_11 = arith.constant 0 : index
    %c1_12 = arith.constant 1 : index
    %c0_13 = arith.constant 0 : index
    %6 = tpu.strided_load %arg5[%c0_11, %c1_12, %c0_13] {strides = array<i32: 1, 2, 1>} : memref<18x18x8xf32, #tpu.memory_space<vmem>>, vector<18x8x8xf32>
    %7 = arith.addf %5, %6 : vector<18x8x8xf32>
    %c0_14 = arith.constant 0 : index
    %c2 = arith.constant 2 : index
    %c0_15 = arith.constant 0 : index
    %8 = tpu.strided_load %arg5[%c0_14, %c2, %c0_15] {strides = array<i32: 1, 2, 1>} : memref<18x18x8xf32, #tpu.memory_space<vmem>>, vector<18x8x8xf32>
    %9 = arith.addf %7, %8 : vector<18x8x8xf32>
    %c0_16 = arith.constant 0 : index
    %c0_17 = arith.constant 0 : index
    %c0_18 = arith.constant 0 : index
    %10 = vector.load %arg6[%c0_16, %c0_17, %c0_18] : memref<18x8x8xf32, #tpu.memory_space<vmem>>, vector<18x8x8xf32>
    tpu.vector_store %arg6[%c0_16, %c0_17, %c0_18], %9 {strides = array<i32>} : memref<18x8x8xf32, #tpu.memory_space<vmem>>, vector<18x8x8xf32>,
    %c0_19 = arith.constant 0 : index
    %c0_20 = arith.constant 0 : index
    %c0_21 = arith.constant 0 : index
    %11 = tpu.strided_load %arg6[%c0_19, %c0_20, %c0_21] {strides = array<i32: 2, 1, 1>} : memref<18x8x8xf32, #tpu.memory_space<vmem>>, vector<8x8x8xf32>
    %c1_22 = arith.constant 1 : index
    %c0_23 = arith.constant 0 : index
    %c0_24 = arith.constant 0 : index
    %12 = tpu.strided_load %arg6[%c1_22, %c0_23, %c0_24] {strides = array<i32: 2, 1, 1>} : memref<18x8x8xf32, #tpu.memory_space<vmem>>, vector<8x8x8xf32>
    %13 = arith.addf %11, %12 : vector<8x8x8xf32>
    %c2_25 = arith.constant 2 : index
    %c0_26 = arith.constant 0 : index
    %c0_27 = arith.constant 0 : index
    %14 = tpu.strided_load %arg6[%c2_25, %c0_26, %c0_27] {strides = array<i32: 2, 1, 1>} : memref<18x8x8xf32, #tpu.memory_space<vmem>>, vector<8x8x8xf32>
    %15 = arith.addf %13, %14 : vector<8x8x8xf32>
    %c0_28 = arith.constant 0 : index
    %c0_29 = arith.constant 0 : index
    %c0_30 = arith.constant 0 : index
    %16 = vector.load %arg3[%c0_28, %c0_29, %c0_30] : memref<8x8x1xf32, #tpu.memory_space<vmem>>, vector<8x8x1xf32>
    %17 = vector.broadcast %16 : vector<8x8x1xf32> to vector<8x8x8xf32>
    %18 = arith.mulf %15, %17 : vector<8x8x8xf32>
    %c0_31 = arith.constant 0 : index
    %c0_32 = arith.constant 0 : index
    %c0_33 = arith.constant 0 : index
    %c0_34 = arith.constant 0 : index
    %19 = vector.load %arg4[%c0_31, %c0_32, %c0_33, %c0_34] : memref<1x8x8x8xf32, #tpu.memory_space<vmem>>, vector<1x8x8x8xf32>
    %20 = vector.shape_cast %19 : vector<1x8x8x8xf32> to vector<8x8x8xf32>
    %21 = vector.shape_cast %18 : vector<8x8x8xf32> to vector<1x8x8x8xf32>
    tpu.vector_store %arg4[%c0_31, %c0_32, %c0_33, %c0_34], %21 {strides = array<i32>} : memref<1x8x8x8xf32, #tpu.memory_space<vmem>>, vector<1x8x8x8xf32>,
    return
  }
  func.func @transform_0(%arg0: i32, %arg1: i32) -> (i32, i32, i32, i32) {
    %c0_i32 = arith.constant 0 : i32
    %c0_i32_0 = arith.constant 0 : i32
    %c0_i32_1 = arith.constant 0 : i32
    return %arg0, %c0_i32, %c0_i32_0, %arg1 : i32, i32, i32, i32
  }
  func.func @transform_1(%arg0: i32, %arg1: i32) -> (i32, i32, i32) {
    %c0_i32 = arith.constant 0 : i32
    %c0_i32_0 = arith.constant 0 : i32
    %c0_i32_1 = arith.constant 0 : i32
    %c0_i32_2 = arith.constant 0 : i32
    return %c0_i32, %c0_i32_0, %c0_i32_1 : i32, i32, i32
  }
  func.func @transform_2(%arg0: i32, %arg1: i32) -> (i32, i32, i32, i32) {
    %c0_i32 = arith.constant 0 : i32
    %c0_i32_0 = arith.constant 0 : i32
    %c0_i32_1 = arith.constant 0 : i32
    return %arg0, %c0_i32, %c0_i32_0, %arg1 : i32, i32, i32, i32
  }
}

</mosaic_0001>

<llo_original>
// kernel: tpu_custom_call.1
$region0: #{tpu_custom_call.1}
  #allocation0 [shape = 'u32[]', space=smem, size = 0x4, offset = 0x4, fixed_abs, tag = 'smem constant byte address 0x4 - core index']
  #allocation1 [shape = 'u32[144,128]{1,0:T(1,128)}', space=vmem, size = 0x12000, scoped, tag = 'internal scratch']
  #allocation2 [shape = 'f32[18,18,8]{2,1,0:T(8,128)}', space=vmem, size = 0x36000, scoped, tag = 'scratch operand']
  #allocation3 [shape = 'f32[18,8,8]{2,1,0:T(8,128)}', space=vmem, size = 0x12000, scoped, tag = 'scratch operand']
  %s0 = inlined_call_operand.vmem [shape: f32[2,16,16,8], index: 0, kind: input, shape index: {}]
  %s1 = inlined_call_operand.vmem [shape: f32[8,8,1], index: 1, kind: input, shape index: {}]
  %s2 = inlined_call_operand.hbm [shape: f32[2,8,8,8], index: 2, kind: output, shape index: {}]
  %s3 = sld [smem:[#allocation0]]
  $region41: #{tpu_custom_call.1} parent=0
    _
  %s5 = ssub.s32 1, %s3
  %s6 = scalar_select 0, %s5, %s3
  $region1: #{tpu_custom_call.1} parent=0
    #allocation4 [shape = 'u8[65536]{0}', space=vmem, size = 0x10000, scoped, tag = 'output window, operand 0']
    #allocation5 [shape = 's32[2]{0}', space=sflag, size = 0x8, scoped, tag = 'scoped memory for tpu_custom_call.1']
    %7 = vsyncpa [#allocation5], 0
    %s8 = scalar_lea.sflag [#allocation5], 1
    %9 = vsyncpa %s8, 0
    loop: start=0, step=1, limit=4
    $region2: #{tpu_custom_call.1} parent=1 // loop_pre_header
      _
    $region3: #{tpu_custom_call.1} parent=1 // loop_header
      %s11 = sphi 0, %s15
      %p12 = scmp.ge.s32.totalorder %s11, 4
      %s18 = sphi 0, %s30
      %s19 = sphi 0, %s26
      %s20 = sphi 0, %s18
      %s21 = sphi 0, %s19
      %s22 = sphi 0, %s20
      %s23 = sphi 0, %s21
      %s35 = sphi 0, %s37
      %s38 = sphi 0, %s35
      %s39 = sphi 0, %s38
      %s55 = sphi 0, %s39
      %s59 = sphi 0, %s59
      %s61 = sphi 0, %s59
      %s62 = sphi 0, %s61
      %s76 = sphi 0, %s62
      %s84 = sphi 0, %s86
      %s87 = sphi 0, %s84
      %s88 = sphi 0, %s87
      %s104 = sphi 0, %s88
    $region4: #{tpu_custom_call.1} parent=1 // loop_header_branch
      %14 = sbr.rel (%p12) target = $region8
    $region5: #{tpu_custom_call.1} parent=1 // loop_body
      %s16 = ssub.s32 %s11, 1
      %s17 = ssub.s32 %s11, 2
      %s24 = sadd.s32 1, %s19
      %p25 = scmp.ge.s32.totalorder %s24, 1
      %s26 = scalar_select %p25, 0, %s24
      %s27 = sadd.s32 1, %s18
      %s28 = scalar_select %p25, %s27, %s18
      %p29 = scmp.ge.s32.totalorder %s28, 2
      %s30 = scalar_select %p29, 0, %s28
      %s31 = ssub.s32 %s18, %s30
      %s32 = ssub.s32 %s19, %s26
      %s33 = sor.u32 %s31, %s32
      %p34 = scmp.eq.s32.totalorder %s33, 0
      %s36 = sadd.s32 %s35, 1
      %s37 = scalar_select %p34, %s35, %s36
      %p40 = pneg %p34
      %p41 = scmp.eq.s32.totalorder %s11, 1
      %p42 = por %p40, %p41
      %p43 = scmp.ne.s32.totalorder %s35, %s38
      %p44 = scmp.eq.s32.totalorder %s11, 0
      %p45 = por %p43, %p44
      %p46 = scmp.ne.s32.totalorder %s35, %s38
      %p47 = scmp.eq.s32.totalorder %s16, 1
      %p48 = por %p46, %p47
      %p49 = scmp.ne.s32.totalorder %s38, %s39
      %p50 = scmp.eq.s32.totalorder %s16, 0
      %p51 = por %p49, %p50
      %p52 = scmp.ne.s32.totalorder %s38, %s39
      %p53 = scmp.eq.s32.totalorder %s17, 1
      %p54 = por %p52, %p53
      %p56 = scmp.ne.s32.totalorder %s39, %s55
      %p57 = scmp.eq.s32.totalorder %s17, 0
      %p58 = por %p56, %p57
      %s60 = sadd.s32 %s59, 1
      %p63 = scmp.eq.s32.totalorder %s11, 1
      %p64 = scmp.ne.s32.totalorder %s59, %s61
      %p65 = scmp.eq.s32.totalorder %s11, 0
      %p66 = por %p64, %p65
      %p67 = scmp.ne.s32.totalorder %s59, %s61
      %p68 = scmp.eq.s32.totalorder %s16, 1
      %p69 = por %p67, %p68
      %p70 = scmp.ne.s32.totalorder %s61, %s62
      %p71 = scmp.eq.s32.totalorder %s16, 0
      %p72 = por %p70, %p71
      %p73 = scmp.ne.s32.totalorder %s61, %s62
      %p74 = scmp.eq.s32.totalorder %s17, 1
      %p75 = por %p73, %p74
      %p77 = scmp.ne.s32.totalorder %s62, %s76
      %p78 = scmp.eq.s32.totalorder %s17, 0
      %p79 = por %p77, %p78
      %s80 = ssub.s32 %s18, %s30
      %s81 = ssub.s32 %s19, %s26
      %s82 = sor.u32 %s80, %s81
      %p83 = scmp.eq.s32.totalorder %s82, 0
      %s85 = sadd.s32 %s84, 1
      %s86 = scalar_select %p83, %s84, %s85
      %p89 = pneg %p83
      %p90 = scmp.eq.s32.totalorder %s11, 1
      %p91 = por %p89, %p90
      %p92 = scmp.ne.s32.totalorder %s84, %s87
      %p93 = scmp.eq.s32.totalorder %s11, 0
      %p94 = por %p92, %p93
      %p95 = scmp.ne.s32.totalorder %s84, %s87
      %p96 = scmp.eq.s32.totalorder %s16, 1
      %p97 = por %p95, %p96
      %p98 = scmp.ne.s32.totalorder %s87, %s88
      %p99 = scmp.eq.s32.totalorder %s16, 0
      %p100 = por %p98, %p99
      %p101 = scmp.ne.s32.totalorder %s87, %s88
      %p102 = scmp.eq.s32.totalorder %s17, 1
      %p103 = por %p101, %p102
      %p105 = scmp.ne.s32.totalorder %s88, %s104
      %p106 = scmp.eq.s32.totalorder %s17, 0
      %p107 = por %p105, %p106
      %p108 = scmp.le.s32.totalorder 1, %s11
      %p109 = scmp.lt.s32.totalorder %s11, 3
      %p110 = pnand %p108, %p109
      %p111 = pneg %p110
      // Predicated region
      $region9: #{tpu_custom_call.1} parent=5 // pred_check
        _
      $region10: #{tpu_custom_call.1} parent=5 // pred_check_branch
        %113 = sbr.rel (%p110) target = $region12
      $region11: #{tpu_custom_call.1} parent=5 // pred_region
        %s114 = ssub.s32 %s11, 1
        // Predicated region
        $region13: #{tpu_custom_call.1} parent=11 // pred_check
          %p115 = pneg %p72
        $region14: #{tpu_custom_call.1} parent=11 // pred_check_branch
          %117 = sbr.rel (%p115) target = $region16
        $region15: #{tpu_custom_call.1} parent=11 // pred_region
          _
        $region16: #{tpu_custom_call.1} parent=11 // pred_fallthru
          _
      $region12: #{tpu_custom_call.1} parent=5 // pred_fallthru
        _
      %p118 = scmp.lt.s32.totalorder %s11, 2
      // Predicated region
      $region17: #{tpu_custom_call.1} parent=5 // pred_check
        %p119 = pneg %p118
      $region18: #{tpu_custom_call.1} parent=5 // pred_check_branch
        %121 = sbr.rel (%p119) target = $region20
      $region19: #{tpu_custom_call.1} parent=5 // pred_region
        // Predicated region
        $region21: #{tpu_custom_call.1} parent=19 // pred_check
          %p122 = pneg %p45
        $region22: #{tpu_custom_call.1} parent=19 // pred_check_branch
          %124 = sbr.rel (%p122) target = $region24
        $region23: #{tpu_custom_call.1} parent=19 // pred_region
          %p125 = scmp.lt.s32.totalorder %s18, 1
          %s126 = scalar_select %p125, %s18, 1
          %p127 = scmp.lt.s32.totalorder %s19, 0
          %s128 = scalar_select %p127, %s19, 0
          %s129 = smul.addr %s126, 32
          %s130 = sadd.s32 %s128, %s129
          %s131 = smul.addr %s130, 8
          %s132 = scalar_lea.vmem %s0, %s131
        $region24: #{tpu_custom_call.1} parent=19 // pred_fallthru
          _
      $region20: #{tpu_custom_call.1} parent=5 // pred_fallthru
        _
      %p133 = scmp.le.s32.totalorder 1, %s11
      %p134 = scmp.lt.s32.totalorder %s11, 3
      %p135 = pnand %p133, %p134
      %p136 = pneg %p135
      // Predicated region
      $region25: #{tpu_custom_call.1} parent=5 // pred_check
        _
      $region26: #{tpu_custom_call.1} parent=5 // pred_check_branch
        %138 = sbr.rel (%p135) target = $region28
      $region27: #{tpu_custom_call.1} parent=5 // pred_region
        %s139 = ssub.s32 %s11, 1
        %p140 = scmp.lt.s32.totalorder %s20, 1
        %s141 = scalar_select %p140, %s20, 1
        %p142 = scmp.lt.s32.totalorder %s21, 0
        %s143 = scalar_select %p142, %s21, 0
        %s144 = smul.addr %s141, 32
        %s145 = sadd.s32 %s143, %s144
        %s146 = smul.addr %s145, 8
        %s147 = scalar_lea.vmem %s0, %s146
        %p148 = pneg %p51
        %p149 = pneg %p48
        %p150 = pneg %p72
        %p151 = pneg %p69
        %p152 = pneg %p100
        %p153 = pneg %p97
        %s154 = sand.u32 %s87, 1
        %s155 = scalar_lea.sflag [#allocation5], %s154
        %s156 = sand.u32 %s87, 1
        %s157 = smul.addr %s156, 64
        %s158 = scalar_lea.vmem [#allocation4], %s157
        %p159 = scmp.lt.s32.totalorder %s20, 1
        %s160 = scalar_select %p159, %s20, 1
        %p161 = scmp.lt.s32.totalorder %s21, 0
        %s162 = scalar_select %p161, %s21, 0
        %s163 = smul.addr %s160, 32
        %s164 = sadd.s32 %s162, %s163
        %s165 = smul.addr %s164, 8
        %s166 = scalar_lea.vmem %s0, %s165
        %v167 = vld [vmem:[%s166] sm:$0xff]
        %v168 = vld [vmem:[%s166 + $0x8] sm:$0xff]
        %v169 = vld [vmem:[%s166 + $0x10] sm:$0xff]
        %v170 = vld [vmem:[%s166 + $0x18] sm:$0xff]
        %v171 = vld [vmem:[%s166 + $0x20] sm:$0xff]
        %v172 = vld [vmem:[%s166 + $0x28] sm:$0xff]
        %v173 = vld [vmem:[%s166 + $0x30] sm:$0xff]
        %v174 = vld [vmem:[%s166 + $0x38] sm:$0xff]
        %v175 = vld [vmem:[%s166 + $0x40] sm:$0xff]
        %v176 = vld [vmem:[%s166 + $0x48] sm:$0xff]
        %v177 = vld [vmem:[%s166 + $0x50] sm:$0xff]
        %v178 = vld [vmem:[%s166 + $0x58] sm:$0xff]
        %v179 = vld [vmem:[%s166 + $0x60] sm:$0xff]
        %v180 = vld [vmem:[%s166 + $0x68] sm:$0xff]
        %v181 = vld [vmem:[%s166 + $0x70] sm:$0xff]
        %v182 = vld [vmem:[%s166 + $0x78] sm:$0xff]
        %v183 = vld [vmem:[%s166 + $0x80] sm:$0xff]
        %v184 = vld [vmem:[%s166 + $0x88] sm:$0xff]
        %v185 = vld [vmem:[%s166 + $0x90] sm:$0xff]
        %v186 = vld [vmem:[%s166 + $0x98] sm:$0xff]
        %v187 = vld [vmem:[%s166 + $0xa0] sm:$0xff]
        %v188 = vld [vmem:[%s166 + $0xa8] sm:$0xff]
        %v189 = vld [vmem:[%s166 + $0xb0] sm:$0xff]
        %v190 = vld [vmem:[%s166 + $0xb8] sm:$0xff]
        %v191 = vld [vmem:[%s166 + $0xc0] sm:$0xff]
        %v192 = vld [vmem:[%s166 + $0xc8] sm:$0xff]
        %v193 = vld [vmem:[%s166 + $0xd0] sm:$0xff]
        %v194 = vld [vmem:[%s166 + $0xd8] sm:$0xff]
        %v195 = vld [vmem:[%s166 + $0xe0] sm:$0xff]
        %v196 = vld [vmem:[%s166 + $0xe8] sm:$0xff]
        %v197 = vld [vmem:[%s166 + $0xf0] sm:$0xff]
        %v198 = vld [vmem:[%s166 + $0xf8] sm:$0xff]
        %vm199 = vcmask 64512
        %200 = vst.msk [vmem:[#allocation2] sm:$0xff] %vm199, 0.0
        %201 = vst.msk [vmem:[#allocation2 + $0x8] sm:$0xff] %vm199, 0.0
        %vm202 = vcmask 58368
        %203 = vst.msk [vmem:[#allocation2 + $0x10] sm:$0x3] %vm202, 0.0
        %204 = vst.msk [vmem:[#allocation2 + $0x18] sm:$0xff] %vm199, 0.0
        %205 = vst.msk [vmem:[#allocation2 + $0x20] sm:$0xff] %vm199, 0.0
        %206 = vst.msk [vmem:[#allocation2 + $0x28] sm:$0x3] %vm202, 0.0
        %207 = vst.msk [vmem:[#allocation2 + $0x30] sm:$0xff] %vm199, 0.0
        %208 = vst.msk [vmem:[#allocation2 + $0x38] sm:$0xff] %vm199, 0.0
        %209 = vst.msk [vmem:[#allocation2 + $0x40] sm:$0x3] %vm202, 0.0
        %210 = vst.msk [vmem:[#allocation2 + $0x48] sm:$0xff] %vm199, 0.0
        %211 = vst.msk [vmem:[#allocation2 + $0x50] sm:$0xff] %vm199, 0.0
        %212 = vst.msk [vmem:[#allocation2 + $0x58] sm:$0x3] %vm202, 0.0
        %213 = vst.msk [vmem:[#allocation2 + $0x60] sm:$0xff] %vm199, 0.0
        %214 = vst.msk [vmem:[#allocation2 + $0x68] sm:$0xff] %vm199, 0.0
        %215 = vst.msk [vmem:[#allocation2 + $0x70] sm:$0x3] %vm202, 0.0
        %216 = vst.msk [vmem:[#allocation2 + $0x78] sm:$0xff] %vm199, 0.0
        %217 = vst.msk [vmem:[#allocation2 + $0x80] sm:$0xff] %vm199, 0.0
        %218 = vst.msk [vmem:[#allocation2 + $0x88] sm:$0x3] %vm202, 0.0
        %219 = vst.msk [vmem:[#allocation2 + $0x90] sm:$0xff] %vm199, 0.0
        %220 = vst.msk [vmem:[#allocation2 + $0x98] sm:$0xff] %vm199, 0.0
        %221 = vst.msk [vmem:[#allocation2 + $0xa0] sm:$0x3] %vm202, 0.0
        %222 = vst.msk [vmem:[#allocation2 + $0xa8] sm:$0xff] %vm199, 0.0
        %223 = vst.msk [vmem:[#allocation2 + $0xb0] sm:$0xff] %vm199, 0.0
        %224 = vst.msk [vmem:[#allocation2 + $0xb8] sm:$0x3] %vm202, 0.0
        %225 = vst.msk [vmem:[#allocation2 + $0xc0] sm:$0xff] %vm199, 0.0
        %226 = vst.msk [vmem:[#allocation2 + $0xc8] sm:$0xff] %vm199, 0.0
        %227 = vst.msk [vmem:[#allocation2 + $0xd0] sm:$0x3] %vm202, 0.0
        %228 = vst.msk [vmem:[#allocation2 + $0xd8] sm:$0xff] %vm199, 0.0
        %229 = vst.msk [vmem:[#allocation2 + $0xe0] sm:$0xff] %vm199, 0.0
        %230 = vst.msk [vmem:[#allocation2 + $0xe8] sm:$0x3] %vm202, 0.0
        %231 = vst.msk [vmem:[#allocation2 + $0xf0] sm:$0xff] %vm199, 0.0
        %232 = vst.msk [vmem:[#allocation2 + $0xf8] sm:$0xff] %vm199, 0.0
        %233 = vst.msk [vmem:[#allocation2 + $0x100] sm:$0x3] %vm202, 0.0
        %234 = vst.msk [vmem:[#allocation2 + $0x108] sm:$0xff] %vm199, 0.0
        %235 = vst.msk [vmem:[#allocation2 + $0x110] sm:$0xff] %vm199, 0.0
        %236 = vst.msk [vmem:[#allocation2 + $0x118] sm:$0x3] %vm202, 0.0
        %237 = vst.msk [vmem:[#allocation2 + $0x120] sm:$0xff] %vm199, 0.0
        %238 = vst.msk [vmem:[#allocation2 + $0x128] sm:$0xff] %vm199, 0.0
        %239 = vst.msk [vmem:[#allocation2 + $0x130] sm:$0x3] %vm202, 0.0
        %240 = vst.msk [vmem:[#allocation2 + $0x138] sm:$0xff] %vm199, 0.0
        %241 = vst.msk [vmem:[#allocation2 + $0x140] sm:$0xff] %vm199, 0.0
        %242 = vst.msk [vmem:[#allocation2 + $0x148] sm:$0x3] %vm202, 0.0
        %243 = vst.msk [vmem:[#allocation2 + $0x150] sm:$0xff] %vm199, 0.0
        %244 = vst.msk [vmem:[#allocation2 + $0x158] sm:$0xff] %vm199, 0.0
        %245 = vst.msk [vmem:[#allocation2 + $0x160] sm:$0x3] %vm202, 0.0
        %246 = vst.msk [vmem:[#allocation2 + $0x168] sm:$0xff] %vm199, 0.0
        %247 = vst.msk [vmem:[#allocation2 + $0x170] sm:$0xff] %vm199, 0.0
        %248 = vst.msk [vmem:[#allocation2 + $0x178] sm:$0x3] %vm202, 0.0
        %249 = vst.msk [vmem:[#allocation2 + $0x180] sm:$0xff] %vm199, 0.0
        %250 = vst.msk [vmem:[#allocation2 + $0x188] sm:$0xff] %vm199, 0.0
        %251 = vst.msk [vmem:[#allocation2 + $0x190] sm:$0x3] %vm202, 0.0
        %252 = vst.msk [vmem:[#allocation2 + $0x198] sm:$0xff] %vm199, 0.0
        %253 = vst.msk [vmem:[#allocation2 + $0x1a0] sm:$0xff] %vm199, 0.0
        %254 = vst.msk [vmem:[#allocation2 + $0x1a8] sm:$0x3] %vm202, 0.0
        %s255 = scalar_lea.vmem [#allocation2], 24
        %256 = vst.msk [vmem:[%s255 + $0x1] sm:$0xff] %vm199, %v167
        %257 = vst.msk [vmem:[%s255 + $0x9] sm:$0xff] %vm199, %v168
        %258 = vst.msk [vmem:[%s255 + $0x19] sm:$0xff] %vm199, %v169
        %259 = vst.msk [vmem:[%s255 + $0x21] sm:$0xff] %vm199, %v170
        %260 = vst.msk [vmem:[%s255 + $0x31] sm:$0xff] %vm199, %v171
        %261 = vst.msk [vmem:[%s255 + $0x39] sm:$0xff] %vm199, %v172
        %262 = vst.msk [vmem:[%s255 + $0x49] sm:$0xff] %vm199, %v173
        %263 = vst.msk [vmem:[%s255 + $0x51] sm:$0xff] %vm199, %v174
        %264 = vst.msk [vmem:[%s255 + $0x61] sm:$0xff] %vm199, %v175
        %265 = vst.msk [vmem:[%s255 + $0x69] sm:$0xff] %vm199, %v176
        %266 = vst.msk [vmem:[%s255 + $0x79] sm:$0xff] %vm199, %v177
        %267 = vst.msk [vmem:[%s255 + $0x81] sm:$0xff] %vm199, %v178
        %268 = vst.msk [vmem:[%s255 + $0x91] sm:$0xff] %vm199, %v179
        %269 = vst.msk [vmem:[%s255 + $0x99] sm:$0xff] %vm199, %v180
        %270 = vst.msk [vmem:[%s255 + $0xa9] sm:$0xff] %vm199, %v181
        %271 = vst.msk [vmem:[%s255 + $0xb1] sm:$0xff] %vm199, %v182
        %272 = vst.msk [vmem:[%s255 + $0xc1] sm:$0xff] %vm199, %v183
        %273 = vst.msk [vmem:[%s255 + $0xc9] sm:$0xff] %vm199, %v184
        %274 = vst.msk [vmem:[%s255 + $0xd9] sm:$0xff] %vm199, %v185
        %275 = vst.msk [vmem:[%s255 + $0xe1] sm:$0xff] %vm199, %v186
        %276 = vst.msk [vmem:[%s255 + $0xf1] sm:$0xff] %vm199, %v187
        %277 = vst.msk [vmem:[%s255 + $0xf9] sm:$0xff] %vm199, %v188
        %278 = vst.msk [vmem:[%s255 + $0x109] sm:$0xff] %vm199, %v189
        %279 = vst.msk [vmem:[%s255 + $0x111] sm:$0xff] %vm199, %v190
        %280 = vst.msk [vmem:[%s255 + $0x121] sm:$0xff] %vm199, %v191
        %281 = vst.msk [vmem:[%s255 + $0x129] sm:$0xff] %vm199, %v192
        %282 = vst.msk [vmem:[%s255 + $0x139] sm:$0xff] %vm199, %v193
        %283 = vst.msk [vmem:[%s255 + $0x141] sm:$0xff] %vm199, %v194
        %284 = vst.msk [vmem:[%s255 + $0x151] sm:$0xff] %vm199, %v195
        %285 = vst.msk [vmem:[%s255 + $0x159] sm:$0xff] %vm199, %v196
        %286 = vst.msk [vmem:[%s255 + $0x169] sm:$0xff] %vm199, %v197
        %287 = vst.msk [vmem:[%s255 + $0x171] sm:$0xff] %vm199, %v198
        %v288 = vld [vmem:[#allocation2] ss:$2 sm:$0xff]
        %s289 = scalar_lea.vmem [#allocation2], 24
        %v290 = vld [vmem:[%s289] ss:$2 sm:$0xff]
        %s291 = scalar_lea.vmem [#allocation2], 48
        %v292 = vld [vmem:[%s291] ss:$2 sm:$0xff]
        %s293 = scalar_lea.vmem [#allocation2], 72
        %v294 = vld [vmem:[%s293] ss:$2 sm:$0xff]
        %s295 = scalar_lea.vmem [#allocation2], 96
        %v296 = vld [vmem:[%s295] ss:$2 sm:$0xff]
        %s297 = scalar_lea.vmem [#allocation2], 120
        %v298 = vld [vmem:[%s297] ss:$2 sm:$0xff]
        %s299 = scalar_lea.vmem [#allocation2], 144
        %v300 = vld [vmem:[%s299] ss:$2 sm:$0xff]
        %s301 = scalar_lea.vmem [#allocation2], 168
        %v302 = vld [vmem:[%s301] ss:$2 sm:$0xff]
        %s303 = scalar_lea.vmem [#allocation2], 192
        %v304 = vld [vmem:[%s303] ss:$2 sm:$0xff]
        %s305 = scalar_lea.vmem [#allocation2], 216
        %v306 = vld [vmem:[%s305] ss:$2 sm:$0xff]
        %s307 = scalar_lea.vmem [#allocation2], 240
        %v308 = vld [vmem:[%s307] ss:$2 sm:$0xff]
        %s309 = scalar_lea.vmem [#allocation2], 264
        %v310 = vld [vmem:[%s309] ss:$2 sm:$0xff]
        %s311 = scalar_lea.vmem [#allocation2], 288
        %v312 = vld [vmem:[%s311] ss:$2 sm:$0xff]
        %s313 = scalar_lea.vmem [#allocation2], 312
        %v314 = vld [vmem:[%s313] ss:$2 sm:$0xff]
        %s315 = scalar_lea.vmem [#allocation2], 336
        %v316 = vld [vmem:[%s315] ss:$2 sm:$0xff]
        %s317 = scalar_lea.vmem [#allocation2], 360
        %v318 = vld [vmem:[%s317] ss:$2 sm:$0xff]
        %s319 = scalar_lea.vmem [#allocation2], 384
        %v320 = vld [vmem:[%s319] ss:$2 sm:$0xff]
        %s321 = scalar_lea.vmem [#allocation2], 408
        %v322 = vld [vmem:[%s321] ss:$2 sm:$0xff]
        %s323 = scalar_lea.vmem [#allocation2], 1
        %v324 = vld [vmem:[%s323] ss:$2 sm:$0xff]
        %s325 = scalar_lea.vmem [#allocation2], 25
        %v326 = vld [vmem:[%s325] ss:$2 sm:$0xff]
        %s327 = scalar_lea.vmem [#allocation2], 49
        %v328 = vld [vmem:[%s327] ss:$2 sm:$0xff]
        %s329 = scalar_lea.vmem [#allocation2], 73
        %v330 = vld [vmem:[%s329] ss:$2 sm:$0xff]
        %s331 = scalar_lea.vmem [#allocation2], 97
        %v332 = vld [vmem:[%s331] ss:$2 sm:$0xff]
        %s333 = scalar_lea.vmem [#allocation2], 121
        %v334 = vld [vmem:[%s333] ss:$2 sm:$0xff]
        %s335 = scalar_lea.vmem [#allocation2], 145
        %v336 = vld [vmem:[%s335] ss:$2 sm:$0xff]
        %s337 = scalar_lea.vmem [#allocation2], 169
        %v338 = vld [vmem:[%s337] ss:$2 sm:$0xff]
        %s339 = scalar_lea.vmem [#allocation2], 193
        %v340 = vld [vmem:[%s339] ss:$2 sm:$0xff]
        %s341 = scalar_lea.vmem [#allocation2], 217
        %v342 = vld [vmem:[%s341] ss:$2 sm:$0xff]
        %s343 = scalar_lea.vmem [#allocation2], 241
        %v344 = vld [vmem:[%s343] ss:$2 sm:$0xff]
        %s345 = scalar_lea.vmem [#allocation2], 265
        %v346 = vld [vmem:[%s345] ss:$2 sm:$0xff]
        %s347 = scalar_lea.vmem [#allocation2], 289
        %v348 = vld [vmem:[%s347] ss:$2 sm:$0xff]
        %s349 = scalar_lea.vmem [#allocation2], 313
        %v350 = vld [vmem:[%s349] ss:$2 sm:$0xff]
        %s351 = scalar_lea.vmem [#allocation2], 337
        %v352 = vld [vmem:[%s351] ss:$2 sm:$0xff]
        %s353 = scalar_lea.vmem [#allocation2], 361
        %v354 = vld [vmem:[%s353] ss:$2 sm:$0xff]
        %s355 = scalar_lea.vmem [#allocation2], 385
        %v356 = vld [vmem:[%s355] ss:$2 sm:$0xff]
        %s357 = scalar_lea.vmem [#allocation2], 409
        %v358 = vld [vmem:[%s357] ss:$2 sm:$0xff]
        %v359 = vadd.f32 %v288, %v324
        %v360 = vadd.f32 %v290, %v326
        %v361 = vadd.f32 %v292, %v328
        %v362 = vadd.f32 %v294, %v330
        %v363 = vadd.f32 %v296, %v332
        %v364 = vadd.f32 %v298, %v334
        %v365 = vadd.f32 %v300, %v336
        %v366 = vadd.f32 %v302, %v338
        %v367 = vadd.f32 %v304, %v340
        %v368 = vadd.f32 %v306, %v342
        %v369 = vadd.f32 %v308, %v344
        %v370 = vadd.f32 %v310, %v346
        %v371 = vadd.f32 %v312, %v348
        %v372 = vadd.f32 %v314, %v350
        %v373 = vadd.f32 %v316, %v352
        %v374 = vadd.f32 %v318, %v354
        %v375 = vadd.f32 %v320, %v356
        %v376 = vadd.f32 %v322, %v358
        %s377 = scalar_lea.vmem [#allocation2], 2
        %v378 = vld [vmem:[%s377] ss:$2 sm:$0xff]
        %s379 = scalar_lea.vmem [#allocation2], 26
        %v380 = vld [vmem:[%s379] ss:$2 sm:$0xff]
        %s381 = scalar_lea.vmem [#allocation2], 50
        %v382 = vld [vmem:[%s381] ss:$2 sm:$0xff]
        %s383 = scalar_lea.vmem [#allocation2], 74
        %v384 = vld [vmem:[%s383] ss:$2 sm:$0xff]
        %s385 = scalar_lea.vmem [#allocation2], 98
        %v386 = vld [vmem:[%s385] ss:$2 sm:$0xff]
        %s387 = scalar_lea.vmem [#allocation2], 122
        %v388 = vld [vmem:[%s387] ss:$2 sm:$0xff]
        %s389 = scalar_lea.vmem [#allocation2], 146
        %v390 = vld [vmem:[%s389] ss:$2 sm:$0xff]
        %s391 = scalar_lea.vmem [#allocation2], 170
        %v392 = vld [vmem:[%s391] ss:$2 sm:$0xff]
        %s393 = scalar_lea.vmem [#allocation2], 194
        %v394 = vld [vmem:[%s393] ss:$2 sm:$0xff]
        %s395 = scalar_lea.vmem [#allocation2], 218
        %v396 = vld [vmem:[%s395] ss:$2 sm:$0xff]
        %s397 = scalar_lea.vmem [#allocation2], 242
        %v398 = vld [vmem:[%s397] ss:$2 sm:$0xff]
        %s399 = scalar_lea.vmem [#allocation2], 266
        %v400 = vld [vmem:[%s399] ss:$2 sm:$0xff]
        %s401 = scalar_lea.vmem [#allocation2], 290
        %v402 = vld [vmem:[%s401] ss:$2 sm:$0xff]
        %s403 = scalar_lea.vmem [#allocation2], 314
        %v404 = vld [vmem:[%s403] ss:$2 sm:$0xff]
        %s405 = scalar_lea.vmem [#allocation2], 338
        %v406 = vld [vmem:[%s405] ss:$2 sm:$0xff]
        %s407 = scalar_lea.vmem [#allocation2], 362
        %v408 = vld [vmem:[%s407] ss:$2 sm:$0xff]
        %s409 = scalar_lea.vmem [#allocation2], 386
        %v410 = vld [vmem:[%s409] ss:$2 sm:$0xff]
        %s411 = scalar_lea.vmem [#allocation2], 410
        %v412 = vld [vmem:[%s411] ss:$2 sm:$0xff]
        %v413 = vadd.f32 %v359, %v378
        %v414 = vadd.f32 %v360, %v380
        %v415 = vadd.f32 %v361, %v382
        %v416 = vadd.f32 %v362, %v384
        %v417 = vadd.f32 %v363, %v386
        %v418 = vadd.f32 %v364, %v388
        %v419 = vadd.f32 %v365, %v390
        %v420 = vadd.f32 %v366, %v392
        %v421 = vadd.f32 %v367, %v394
        %v422 = vadd.f32 %v368, %v396
        %v423 = vadd.f32 %v369, %v398
        %v424 = vadd.f32 %v370, %v400
        %v425 = vadd.f32 %v371, %v402
        %v426 = vadd.f32 %v372, %v404
        %v427 = vadd.f32 %v373, %v406
        %v428 = vadd.f32 %v374, %v408
        %v429 = vadd.f32 %v375, %v410
        %v430 = vadd.f32 %v376, %v412
        %431 = vst.msk [vmem:[#allocation3] sm:$0xff] %vm199, %v413
        %432 = vst.msk [vmem:[#allocation3 + $0x8] sm:$0xff] %vm199, %v414
        %433 = vst.msk [vmem:[#allocation3 + $0x10] sm:$0xff] %vm199, %v415
        %434 = vst.msk [vmem:[#allocation3 + $0x18] sm:$0xff] %vm199, %v416
        %435 = vst.msk [vmem:[#allocation3 + $0x20] sm:$0xff] %vm199, %v417
        %436 = vst.msk [vmem:[#allocation3 + $0x28] sm:$0xff] %vm199, %v418
        %437 = vst.msk [vmem:[#allocation3 + $0x30] sm:$0xff] %vm199, %v419
        %438 = vst.msk [vmem:[#allocation3 + $0x38] sm:$0xff] %vm199, %v420
        %439 = vst.msk [vmem:[#allocation3 + $0x40] sm:$0xff] %vm199, %v421
        %440 = vst.msk [vmem:[#allocation3 + $0x48] sm:$0xff] %vm199, %v422
        %441 = vst.msk [vmem:[#allocation3 + $0x50] sm:$0xff] %vm199, %v423
        %442 = vst.msk [vmem:[#allocation3 + $0x58] sm:$0xff] %vm199, %v424
        %443 = vst.msk [vmem:[#allocation3 + $0x60] sm:$0xff] %vm199, %v425
        %444 = vst.msk [vmem:[#allocation3 + $0x68] sm:$0xff] %vm199, %v426
        %445 = vst.msk [vmem:[#allocation3 + $0x70] sm:$0xff] %vm199, %v427
        %446 = vst.msk [vmem:[#allocation3 + $0x78] sm:$0xff] %vm199, %v428
        %447 = vst.msk [vmem:[#allocation3 + $0x80] sm:$0xff] %vm199, %v429
        %448 = vst.msk [vmem:[#allocation3 + $0x88] sm:$0xff] %vm199, %v430
        %v449 = vld [vmem:[#allocation3] sm:$0xff]
        %v450 = vld [vmem:[#allocation3 + $0x10] sm:$0xff]
        %v451 = vld [vmem:[#allocation3 + $0x20] sm:$0xff]
        %v452 = vld [vmem:[#allocation3 + $0x30] sm:$0xff]
        %v453 = vld [vmem:[#allocation3 + $0x40] sm:$0xff]
        %v454 = vld [vmem:[#allocation3 + $0x50] sm:$0xff]
        %v455 = vld [vmem:[#allocation3 + $0x60] sm:$0xff]
        %v456 = vld [vmem:[#allocation3 + $0x70] sm:$0xff]
        %s457 = scalar_lea.vmem [#allocation3], 8
        %v458 = vld [vmem:[%s457] sm:$0xff]
        %v459 = vld [vmem:[%s457 + $0x10] sm:$0xff]
        %v460 = vld [vmem:[%s457 + $0x20] sm:$0xff]
        %v461 = vld [vmem:[%s457 + $0x30] sm:$0xff]
        %v462 = vld [vmem:[%s457 + $0x40] sm:$0xff]
        %v463 = vld [vmem:[%s457 + $0x50] sm:$0xff]
        %v464 = vld [vmem:[%s457 + $0x60] sm:$0xff]
        %v465 = vld [vmem:[%s457 + $0x70] sm:$0xff]
        %v466 = vadd.f32 %v449, %v458
        %v467 = vadd.f32 %v450, %v459
        %v468 = vadd.f32 %v451, %v460
        %v469 = vadd.f32 %v452, %v461
        %v470 = vadd.f32 %v453, %v462
        %v471 = vadd.f32 %v454, %v463
        %v472 = vadd.f32 %v455, %v464
        %v473 = vadd.f32 %v456, %v465
        %s474 = scalar_lea.vmem [#allocation3], 16
        %v475 = vld [vmem:[%s474] sm:$0xff]
        %v476 = vld [vmem:[%s474 + $0x10] sm:$0xff]
        %v477 = vld [vmem:[%s474 + $0x20] sm:$0xff]
        %v478 = vld [vmem:[%s474 + $0x30] sm:$0xff]
        %v479 = vld [vmem:[%s474 + $0x40] sm:$0xff]
        %v480 = vld [vmem:[%s474 + $0x50] sm:$0xff]
        %v481 = vld [vmem:[%s474 + $0x60] sm:$0xff]
        %v482 = vld [vmem:[%s474 + $0x70] sm:$0xff]
        %v483 = vadd.f32 %v466, %v475
        %v484 = vadd.f32 %v467, %v476
        %v485 = vadd.f32 %v468, %v477
        %v486 = vadd.f32 %v469, %v478
        %v487 = vadd.f32 %v470, %v479
        %v488 = vadd.f32 %v471, %v480
        %v489 = vadd.f32 %v472, %v481
        %v490 = vadd.f32 %v473, %v482
        %v491 = vld [vmem:[%s1] sm:$0xff]
        %v492 = vld [vmem:[%s1 + $0x8] sm:$0xff]
        %v493 = vld [vmem:[%s1 + $0x10] sm:$0xff]
        %v494 = vld [vmem:[%s1 + $0x18] sm:$0xff]
        %v495 = vld [vmem:[%s1 + $0x20] sm:$0xff]
        %v496 = vld [vmem:[%s1 + $0x28] sm:$0xff]
        %v497 = vld [vmem:[%s1 + $0x30] sm:$0xff]
        %v498 = vld [vmem:[%s1 + $0x38] sm:$0xff]
        %500 = vset.pattern.permute.xlu0 0
        %501 = vperm.xlu0 %500, %v491
        %v502 = vpop.permute.xlu0 %501
        %505 = vset.pattern.permute.xlu0 0
        %506 = vperm.xlu0 %505, %v492
        %v507 = vpop.permute.xlu0 %506
        %510 = vset.pattern.permute.xlu0 0
        %511 = vperm.xlu0 %510, %v493
        %v512 = vpop.permute.xlu0 %511
        %515 = vset.pattern.permute.xlu0 0
        %516 = vperm.xlu0 %515, %v494
        %v517 = vpop.permute.xlu0 %516
        %520 = vset.pattern.permute.xlu0 0
        %521 = vperm.xlu0 %520, %v495
        %v522 = vpop.permute.xlu0 %521
        %525 = vset.pattern.permute.xlu0 0
        %526 = vperm.xlu0 %525, %v496
        %v527 = vpop.permute.xlu0 %526
        %530 = vset.pattern.permute.xlu0 0
        %531 = vperm.xlu0 %530, %v497
        %v532 = vpop.permute.xlu0 %531
        %535 = vset.pattern.permute.xlu0 0
        %536 = vperm.xlu0 %535, %v498
        %v537 = vpop.permute.xlu0 %536
        %v539 = vmul.f32 %v483, %v502
        %v540 = vmul.f32 %v484, %v507
        %v541 = vmul.f32 %v485, %v512
        %v542 = vmul.f32 %v486, %v517
        %v543 = vmul.f32 %v487, %v522
        %v544 = vmul.f32 %v488, %v527
        %v545 = vmul.f32 %v489, %v532
        %v546 = vmul.f32 %v490, %v537
        %547 = vst.msk [vmem:[%s158] sm:$0xff] %vm199, %v539
        %548 = vst.msk [vmem:[%s158 + $0x8] sm:$0xff] %vm199, %v540
        %549 = vst.msk [vmem:[%s158 + $0x10] sm:$0xff] %vm199, %v541
        %550 = vst.msk [vmem:[%s158 + $0x18] sm:$0xff] %vm199, %v542
        %551 = vst.msk [vmem:[%s158 + $0x20] sm:$0xff] %vm199, %v543
        %552 = vst.msk [vmem:[%s158 + $0x28] sm:$0xff] %vm199, %v544
        %553 = vst.msk [vmem:[%s158 + $0x30] sm:$0xff] %vm199, %v545
        %554 = vst.msk [vmem:[%s158 + $0x38] sm:$0xff] %vm199, %v546
        %s555 = sand.u32 %s87, 1
        %s556 = scalar_lea.sflag [#allocation5], %s555
        %s557 = sand.u32 %s87, 1
        %s558 = smul.addr %s557, 64
        %s559 = scalar_lea.vmem [#allocation4], %s558
        // Predicated region
        $region29: #{tpu_custom_call.1} parent=27 // pred_check
          %p560 = pneg %p97
        $region30: #{tpu_custom_call.1} parent=27 // pred_check_branch
          %562 = sbr.rel (%p560) target = $region32
        $region31: #{tpu_custom_call.1} parent=27 // pred_region
          %s564 = ssub.s32 1024, 1024
          %565 = vsyncadd %s556, %s564
          %s566 = smul.addr %s20, 8
          %s567 = sadd.s32 %s21, %s566
          %s568 = smul.addr %s567, 128
          %s569 = scalar_lea.hbm %s2, %s568
          %s570 = sshll.u32 %s559, 4
          %s571 = int_to_ptr.vmem [resolvable:$true] %s570
          %576 = dma.vmem_to_hbm [thread:$0]  %s571, 1024, %s569, %s556, 128, 128, 8
        $region32: #{tpu_custom_call.1} parent=27 // pred_fallthru
          _
      $region28: #{tpu_custom_call.1} parent=5 // pred_fallthru
        _
      %p577 = scmp.le.s32.totalorder 2, %s11
      // Predicated region
      $region33: #{tpu_custom_call.1} parent=5 // pred_check
        %p578 = pneg %p577
      $region34: #{tpu_custom_call.1} parent=5 // pred_check_branch
        %580 = sbr.rel (%p578) target = $region36
      $region35: #{tpu_custom_call.1} parent=5 // pred_region
        %s581 = ssub.s32 %s11, 2
        // Predicated region
        $region37: #{tpu_custom_call.1} parent=35 // pred_check
          %p582 = pneg %p103
        $region38: #{tpu_custom_call.1} parent=35 // pred_check_branch
          %584 = sbr.rel (%p582) target = $region40
        $region39: #{tpu_custom_call.1} parent=35 // pred_region
          %s585 = sand.u32 %s88, 1
          %s586 = scalar_lea.sflag [#allocation5], %s585
          %s587 = sand.u32 %s88, 1
          %s588 = smul.addr %s587, 64
          %s589 = scalar_lea.vmem [#allocation4], %s588
          %590 = dma.done %s586, 1024
        $region40: #{tpu_custom_call.1} parent=35 // pred_fallthru
          _
      $region36: #{tpu_custom_call.1} parent=5 // pred_fallthru
        _
    $region6: #{tpu_custom_call.1} parent=1 // loop_footer
      %s15 = sadd.s32 1, %s11
    $region7: #{tpu_custom_call.1} parent=1 // loop_footer_branch
      %10 = sbr.rel target = $region3
    $region8: #{tpu_custom_call.1} parent=1 // loop_exit
      _
    %591 = vsyncpa [#allocation5], 1
    %s592 = scalar_lea.sflag [#allocation5], 1
    %593 = vsyncpa %s592, 1

</llo_original>
